<compile_context>
chip_gen: v5e
topology: v5e:2x2
jax: 0.10.0
libtpu: 0.0.40
codegen_flags: <defaults>
</compile_context>

<pallas_src>
import jax
import jax.numpy as jnp
from jax import lax
from jax.experimental import pallas as pl
from jax.experimental.pallas import tpu as pltpu


def _pick_nb(N, HW, bytes_per_elem, budget=12 * 2**20):
    """Batch elements per grid step: amortize per-step overhead, stay in VMEM.

    Prefers >=2 grid steps (keeps both v7x TensorCores busy on the 'parallel'
    axis) with lane-aligned blocks; for tiny N falls back to a single step
    (block == full array, always layout-legal)."""
    for nb in (8, 4, 2):
        if (N % nb == 0 and N // nb >= 2 and (nb * HW) % 128 == 0
                and 2 * nb * bytes_per_elem <= budget):
            return nb
    if 2 * N * bytes_per_elem <= budget:
        return N
    # TODO(synk): very large N with HW not a multiple of 128 needs a
    # halo-windowed lane tiling of HW; fall back to per-element steps.
    return 1


def depthwise_down(img, params):
    N, C, H, W = img.shape
    assert C == H == W, "DepthWiseDown's permute+cat requires a cubic NCHW input"
    D = params["Xp_b"].shape[0]
    OC = params["T_b"].shape[0]
    HW = H * W

    f32 = jnp.float32
    img = img.astype(f32)

    # ---------------- batching ------------------------------------------------
    bytes_per_elem = (2 * C + OC) * HW * 4
    NB = _pick_nb(N, HW, bytes_per_elem)
    steps = N // NB
    L = NB * HW                       # lane width of one grid step

    # ---------------- glue (plain JAX): dedup'd lane-dense slab ---------------
    perm = jnp.transpose(img, (0, 3, 1, 2))                        # img.permute(0,3,1,2)
    slab = jnp.concatenate([img, perm], axis=1).reshape(N, 2 * C, HW)
    slab = jnp.transpose(slab, (1, 0, 2)).reshape(2 * C, N * HW)   # (2C, N*HW)

    # ---------------- exact weight folding (f32 linear algebra) ---------------
    T = params["T_w"].reshape(OC, 3 * D).astype(f32)               # (OC, 3D)
    effb = params["T_b"].astype(f32)
    branch_w, taps = [], []
    for b, pre in enumerate("XYZ"):
        Pw = params[pre + "p_w"].reshape(D, C).astype(f32)
        Tb = T[:, b * D:(b + 1) * D]
        branch_w.append(Tb @ Pw)                                   # (OC, C)
        effb = effb + Tb @ (params[pre + "p_b"].astype(f32)
                            + Pw @ params[pre + "d_b"].astype(f32))
        taps.append(params[pre + "d_w"].reshape(C, 9).T.astype(f32))  # (9, C)
    # per-tap folded 1x1 weights on the dedup'd slab rows:
    #   cols [0:C]  -> img rows (X branch), cols [C:2C] -> perm rows (Y + Z)
    effw2 = jnp.concatenate(
        [branch_w[0][None] * taps[0][:, None, :],
         branch_w[1][None] * taps[1][:, None, :]
         + branch_w[2][None] * taps[2][:, None, :]],
        axis=2)                                                    # (9, OC, 2C)
    effb = effb[:, None]                                           # (OC, 1)

    # ---------------- per-tap border masks (tiled over the NB chunks) ---------
    p_idx = jnp.arange(HW, dtype=jnp.int32)
    hh, ww = p_idx // W, p_idx % W
    rows = []
    for dh in (-1, 0, 1):
        for dw in (-1, 0, 1):
            ok = ((hh + dh >= 0) & (hh + dh < H) &
                  (ww + dw >= 0) & (ww + dw < W))
            rows.append(ok.astype(f32))
    masks = jnp.tile(jnp.stack(rows, axis=0), (1, NB))             # (9, L)

    # ---------------- kernel --------------------------------------------------
    def kernel(x_ref, m_ref, w_ref, b_ref, o_ref):
        x = x_ref[...]                                             # (2C, L)
        # center tap (dh=0, dw=0): no border mask, also initializes res
        res = jnp.dot(w_ref[4], x, preferred_element_type=f32)     # (OC, L)
        for dh in (-1, 0, 1):
            for dw in (-1, 0, 1):
                if dh == 0 and dw == 0:
                    continue
                t = (dh + 1) * 3 + (dw + 1)
                # tap value[p] = x[p + dh*W + dw]  ==  roll(x, -(dh*W+dw))[p];
                # the lanes the circular roll wraps are exactly the masked ones.
                shift = (-(dh * W + dw)) % L
                xs = pltpu.roll(x, shift=shift, axis=1)
                part = jnp.dot(w_ref[t], xs, preferred_element_type=f32)
                res = res + part * m_ref[t:t + 1, :]
        o_ref[...] = (res + b_ref[...]).astype(o_ref.dtype)

    block_bytes = 2 * NB * bytes_per_elem                          # dbl-buffered in+out
    const_bytes = (9 * L + 9 * OC * 2 * C + OC) * 4
    vmem_limit = int(min(48 * 2**20, max(16 * 2**20, 4 * (block_bytes + const_bytes))))

    out_flat = pl.pallas_call(
        kernel,
        out_shape=jax.ShapeDtypeStruct((OC, N * HW), f32),
        grid=(steps,),
        in_specs=[
            pl.BlockSpec((2 * C, L), lambda n: (0, n)),            # NB-element slab
            pl.BlockSpec((9, L), lambda n: (0, 0)),                # border masks
            pl.BlockSpec((9, OC, 2 * C), lambda n: (0, 0, 0)),     # per-tap folded 1x1
            pl.BlockSpec((OC, 1), lambda n: (0, 0)),               # folded bias
        ],
        out_specs=pl.BlockSpec((OC, L), lambda n: (0, n)),
        compiler_params=pltpu.CompilerParams(
            dimension_semantics=("parallel",),
            vmem_limit_bytes=vmem_limit),
    )(slab, masks, effw2, effb)

    return jnp.transpose(out_flat.reshape(OC, N, H, W), (1, 0, 2, 3))


def init_params(key, in_c, depth_c, out_c):
    ks = jax.random.split(key, 14)

    def w(k, shape, scale=0.1):
        return jax.random.normal(k, shape, jnp.float32) * scale

    return {
        "Xd_w": w(ks[0], (in_c, 1, 3, 3)), "Xd_b": w(ks[1], (in_c,)),
        "Xp_w": w(ks[2], (depth_c, in_c, 1, 1)), "Xp_b": w(ks[3], (depth_c,)),
        "Yd_w": w(ks[4], (in_c, 1, 3, 3)), "Yd_b": w(ks[5], (in_c,)),
        "Yp_w": w(ks[6], (depth_c, in_c, 1, 1)), "Yp_b": w(ks[7], (depth_c,)),
        "Zd_w": w(ks[8], (in_c, 1, 3, 3)), "Zd_b": w(ks[9], (in_c,)),
        "Zp_w": w(ks[10], (depth_c, in_c, 1, 1)), "Zp_b": w(ks[11], (depth_c,)),
        "T_w": w(ks[12], (out_c, 3 * depth_c, 1, 1)), "T_b": w(ks[13], (out_c,)),
    }


def _ref_forward(img, p):
    # pure-JAX reference mirroring the PyTorch forward exactly
    dn = ("NCHW", "OIHW", "NCHW")

    def dw(x, w, b):
        o = lax.conv_general_dilated(x, w, (1, 1), ((1, 1), (1, 1)),
                                     dimension_numbers=dn,
                                     feature_group_count=x.shape[1])
        return o + b[None, :, None, None]

    def pw(x, w, b):
        o = lax.conv_general_dilated(x, w, (1, 1), "VALID", dimension_numbers=dn)
        return o + b[None, :, None, None]

    x = pw(dw(img, p["Xd_w"], p["Xd_b"]), p["Xp_w"], p["Xp_b"])
    pimg = jnp.transpose(img, (0, 3, 1, 2))
    y = pw(dw(pimg, p["Yd_w"], p["Yd_b"]), p["Yp_w"], p["Yp_b"])
    z = pw(dw(pimg, p["Zd_w"], p["Zd_b"]), p["Zp_w"], p["Zp_b"])
    t = jnp.concatenate([x, y, z], axis=1)
    return pw(t, p["T_w"], p["T_b"])


if __name__ == "__main__":
    N, in_c, depth_c, out_c = 2, 16, 4, 8
    key = jax.random.PRNGKey(0)
    k_img, k_par = jax.random.split(key)

    # the module's forward only type-checks when C == H == W
    img = jax.random.normal(k_img, (N, in_c, in_c, in_c), jnp.float32)
    params = init_params(k_par, in_c, depth_c, out_c)

    out = jax.block_until_ready(jax.jit(depthwise_down)(img, params))
    ref = _ref_forward(img, params)

    assert out.shape == ref.shape == (N, out_c, in_c, in_c)
    max_err = float(jnp.max(jnp.abs(out - ref)))
    assert max_err < 5e-4, max_err
    print("KERNEL_OK")
</pallas_src>

<mosaic_0001>
module attributes {stable_mosaic.version = 11 : i64} {
  func.func @kernel(%arg0: i32, %arg1: memref<32x512xf32, #tpu.memory_space<vmem>>, %arg2: memref<9x512xf32, #tpu.memory_space<vmem>>, %arg3: memref<9x8x32xf32, #tpu.memory_space<vmem>>, %arg4: memref<8x1xf32, #tpu.memory_space<vmem>>, %arg5: memref<8x512xf32, #tpu.memory_space<vmem>>) attributes {dimension_semantics = [#tpu.dimension_semantics<parallel>], iteration_bounds = array<i64: 1>, scalar_prefetch = 0 : i64, scratch_operands = 0 : i64, tpu.core_type = #tpu.core_type<tc>, window_params = [{transform_indices = @transform_0, window_bounds = array<i64: 32, 512>}, {pipeline_mode = #tpu.pipeline_mode<synchronous>, transform_indices = @transform_1, window_bounds = array<i64: 9, 512>}, {pipeline_mode = #tpu.pipeline_mode<synchronous>, transform_indices = @transform_2, window_bounds = array<i64: 9, 8, 32>}, {pipeline_mode = #tpu.pipeline_mode<synchronous>, transform_indices = @transform_3, window_bounds = array<i64: 8, 1>}, {transform_indices = @transform_4, window_bounds = array<i64: 8, 512>}]} {
    %c0 = arith.constant 0 : index
    %c0_0 = arith.constant 0 : index
    %0 = vector.load %arg1[%c0, %c0_0] : memref<32x512xf32, #tpu.memory_space<vmem>>, vector<32x512xf32>
    %c4 = arith.constant 4 : index
    %c0_1 = arith.constant 0 : index
    %c0_2 = arith.constant 0 : index
    %1 = vector.load %arg3[%c4, %c0_1, %c0_2] : memref<9x8x32xf32, #tpu.memory_space<vmem>>, vector<1x8x32xf32>
    %2 = vector.shape_cast %1 : vector<1x8x32xf32> to vector<8x32xf32>
    %cst = arith.constant dense<0.000000e+00> : vector<8x512xf32>
    %3 = tpu.matmul %2, %0, %cst {dimension_numbers = #tpu.dot_dimension_numbers<[1], [0], [0], [1], [0, 0, 1, 1], [], []>} : vector<8x32xf32>, vector<32x512xf32>, vector<8x512xf32> -> vector<8x512xf32>
    %c17_i32 = arith.constant 17 : i32
    %4 = tpu.dynamic_rotate %0 by %c17_i32 dim 1 : vector<32x512xf32>, i32 -> vector<32x512xf32>
    %c0_3 = arith.constant 0 : index
    %c0_4 = arith.constant 0 : index
    %c0_5 = arith.constant 0 : index
    %5 = vector.load %arg3[%c0_3, %c0_4, %c0_5] : memref<9x8x32xf32, #tpu.memory_space<vmem>>, vector<1x8x32xf32>
    %6 = vector.shape_cast %5 : vector<1x8x32xf32> to vector<8x32xf32>
    %cst_6 = arith.constant dense<0.000000e+00> : vector<8x512xf32>
    %7 = tpu.matmul %6, %4, %cst_6 {dimension_numbers = #tpu.dot_dimension_numbers<[1], [0], [0], [1], [0, 0, 1, 1], [], []>} : vector<8x32xf32>, vector<32x512xf32>, vector<8x512xf32> -> vector<8x512xf32>
    %c0_7 = arith.constant 0 : index
    %c0_8 = arith.constant 0 : index
    %8 = vector.load %arg2[%c0_7, %c0_8] : memref<9x512xf32, #tpu.memory_space<vmem>>, vector<1x512xf32>
    %9 = vector.broadcast %8 : vector<1x512xf32> to vector<8x512xf32>
    %10 = arith.mulf %7, %9 : vector<8x512xf32>
    %11 = arith.addf %3, %10 : vector<8x512xf32>
    %c16_i32 = arith.constant 16 : i32
    %12 = tpu.dynamic_rotate %0 by %c16_i32 dim 1 : vector<32x512xf32>, i32 -> vector<32x512xf32>
    %c1 = arith.constant 1 : index
    %c0_9 = arith.constant 0 : index
    %c0_10 = arith.constant 0 : index
    %13 = vector.load %arg3[%c1, %c0_9, %c0_10] : memref<9x8x32xf32, #tpu.memory_space<vmem>>, vector<1x8x32xf32>
    %14 = vector.shape_cast %13 : vector<1x8x32xf32> to vector<8x32xf32>
    %cst_11 = arith.constant dense<0.000000e+00> : vector<8x512xf32>
    %15 = tpu.matmul %14, %12, %cst_11 {dimension_numbers = #tpu.dot_dimension_numbers<[1], [0], [0], [1], [0, 0, 1, 1], [], []>} : vector<8x32xf32>, vector<32x512xf32>, vector<8x512xf32> -> vector<8x512xf32>
    %c1_12 = arith.constant 1 : index
    %c0_13 = arith.constant 0 : index
    %16 = vector.load %arg2[%c1_12, %c0_13] : memref<9x512xf32, #tpu.memory_space<vmem>>, vector<1x512xf32>
    %17 = vector.broadcast %16 : vector<1x512xf32> to vector<8x512xf32>
    %18 = arith.mulf %15, %17 : vector<8x512xf32>
    %19 = arith.addf %11, %18 : vector<8x512xf32>
    %c15_i32 = arith.constant 15 : i32
    %20 = tpu.dynamic_rotate %0 by %c15_i32 dim 1 : vector<32x512xf32>, i32 -> vector<32x512xf32>
    %c2 = arith.constant 2 : index
    %c0_14 = arith.constant 0 : index
    %c0_15 = arith.constant 0 : index
    %21 = vector.load %arg3[%c2, %c0_14, %c0_15] : memref<9x8x32xf32, #tpu.memory_space<vmem>>, vector<1x8x32xf32>
    %22 = vector.shape_cast %21 : vector<1x8x32xf32> to vector<8x32xf32>
    %cst_16 = arith.constant dense<0.000000e+00> : vector<8x512xf32>
    %23 = tpu.matmul %22, %20, %cst_16 {dimension_numbers = #tpu.dot_dimension_numbers<[1], [0], [0], [1], [0, 0, 1, 1], [], []>} : vector<8x32xf32>, vector<32x512xf32>, vector<8x512xf32> -> vector<8x512xf32>
    %c2_17 = arith.constant 2 : index
    %c0_18 = arith.constant 0 : index
    %24 = vector.load %arg2[%c2_17, %c0_18] : memref<9x512xf32, #tpu.memory_space<vmem>>, vector<1x512xf32>
    %25 = vector.broadcast %24 : vector<1x512xf32> to vector<8x512xf32>
    %26 = arith.mulf %23, %25 : vector<8x512xf32>
    %27 = arith.addf %19, %26 : vector<8x512xf32>
    %c1_i32 = arith.constant 1 : i32
    %28 = tpu.dynamic_rotate %0 by %c1_i32 dim 1 : vector<32x512xf32>, i32 -> vector<32x512xf32>
    %c3 = arith.constant 3 : index
    %c0_19 = arith.constant 0 : index
    %c0_20 = arith.constant 0 : index
    %29 = vector.load %arg3[%c3, %c0_19, %c0_20] : memref<9x8x32xf32, #tpu.memory_space<vmem>>, vector<1x8x32xf32>
    %30 = vector.shape_cast %29 : vector<1x8x32xf32> to vector<8x32xf32>
    %cst_21 = arith.constant dense<0.000000e+00> : vector<8x512xf32>
    %31 = tpu.matmul %30, %28, %cst_21 {dimension_numbers = #tpu.dot_dimension_numbers<[1], [0], [0], [1], [0, 0, 1, 1], [], []>} : vector<8x32xf32>, vector<32x512xf32>, vector<8x512xf32> -> vector<8x512xf32>
    %c3_22 = arith.constant 3 : index
    %c0_23 = arith.constant 0 : index
    %32 = vector.load %arg2[%c3_22, %c0_23] : memref<9x512xf32, #tpu.memory_space<vmem>>, vector<1x512xf32>
    %33 = vector.broadcast %32 : vector<1x512xf32> to vector<8x512xf32>
    %34 = arith.mulf %31, %33 : vector<8x512xf32>
    %35 = arith.addf %27, %34 : vector<8x512xf32>
    %c511_i32 = arith.constant 511 : i32
    %36 = tpu.dynamic_rotate %0 by %c511_i32 dim 1 : vector<32x512xf32>, i32 -> vector<32x512xf32>
    %c5 = arith.constant 5 : index
    %c0_24 = arith.constant 0 : index
    %c0_25 = arith.constant 0 : index
    %37 = vector.load %arg3[%c5, %c0_24, %c0_25] : memref<9x8x32xf32, #tpu.memory_space<vmem>>, vector<1x8x32xf32>
    %38 = vector.shape_cast %37 : vector<1x8x32xf32> to vector<8x32xf32>
    %cst_26 = arith.constant dense<0.000000e+00> : vector<8x512xf32>
    %39 = tpu.matmul %38, %36, %cst_26 {dimension_numbers = #tpu.dot_dimension_numbers<[1], [0], [0], [1], [0, 0, 1, 1], [], []>} : vector<8x32xf32>, vector<32x512xf32>, vector<8x512xf32> -> vector<8x512xf32>
    %c5_27 = arith.constant 5 : index
    %c0_28 = arith.constant 0 : index
    %40 = vector.load %arg2[%c5_27, %c0_28] : memref<9x512xf32, #tpu.memory_space<vmem>>, vector<1x512xf32>
    %41 = vector.broadcast %40 : vector<1x512xf32> to vector<8x512xf32>
    %42 = arith.mulf %39, %41 : vector<8x512xf32>
    %43 = arith.addf %35, %42 : vector<8x512xf32>
    %c497_i32 = arith.constant 497 : i32
    %44 = tpu.dynamic_rotate %0 by %c497_i32 dim 1 : vector<32x512xf32>, i32 -> vector<32x512xf32>
    %c6 = arith.constant 6 : index
    %c0_29 = arith.constant 0 : index
    %c0_30 = arith.constant 0 : index
    %45 = vector.load %arg3[%c6, %c0_29, %c0_30] : memref<9x8x32xf32, #tpu.memory_space<vmem>>, vector<1x8x32xf32>
    %46 = vector.shape_cast %45 : vector<1x8x32xf32> to vector<8x32xf32>
    %cst_31 = arith.constant dense<0.000000e+00> : vector<8x512xf32>
    %47 = tpu.matmul %46, %44, %cst_31 {dimension_numbers = #tpu.dot_dimension_numbers<[1], [0], [0], [1], [0, 0, 1, 1], [], []>} : vector<8x32xf32>, vector<32x512xf32>, vector<8x512xf32> -> vector<8x512xf32>
    %c6_32 = arith.constant 6 : index
    %c0_33 = arith.constant 0 : index
    %48 = vector.load %arg2[%c6_32, %c0_33] : memref<9x512xf32, #tpu.memory_space<vmem>>, vector<1x512xf32>
    %49 = vector.broadcast %48 : vector<1x512xf32> to vector<8x512xf32>
    %50 = arith.mulf %47, %49 : vector<8x512xf32>
    %51 = arith.addf %43, %50 : vector<8x512xf32>
    %c496_i32 = arith.constant 496 : i32
    %52 = tpu.dynamic_rotate %0 by %c496_i32 dim 1 : vector<32x512xf32>, i32 -> vector<32x512xf32>
    %c7 = arith.constant 7 : index
    %c0_34 = arith.constant 0 : index
    %c0_35 = arith.constant 0 : index
    %53 = vector.load %arg3[%c7, %c0_34, %c0_35] : memref<9x8x32xf32, #tpu.memory_space<vmem>>, vector<1x8x32xf32>
    %54 = vector.shape_cast %53 : vector<1x8x32xf32> to vector<8x32xf32>
    %cst_36 = arith.constant dense<0.000000e+00> : vector<8x512xf32>
    %55 = tpu.matmul %54, %52, %cst_36 {dimension_numbers = #tpu.dot_dimension_numbers<[1], [0], [0], [1], [0, 0, 1, 1], [], []>} : vector<8x32xf32>, vector<32x512xf32>, vector<8x512xf32> -> vector<8x512xf32>
    %c7_37 = arith.constant 7 : index
    %c0_38 = arith.constant 0 : index
    %56 = vector.load %arg2[%c7_37, %c0_38] : memref<9x512xf32, #tpu.memory_space<vmem>>, vector<1x512xf32>
    %57 = vector.broadcast %56 : vector<1x512xf32> to vector<8x512xf32>
    %58 = arith.mulf %55, %57 : vector<8x512xf32>
    %59 = arith.addf %51, %58 : vector<8x512xf32>
    %c495_i32 = arith.constant 495 : i32
    %60 = tpu.dynamic_rotate %0 by %c495_i32 dim 1 : vector<32x512xf32>, i32 -> vector<32x512xf32>
    %c8 = arith.constant 8 : index
    %c0_39 = arith.constant 0 : index
    %c0_40 = arith.constant 0 : index
    %61 = vector.load %arg3[%c8, %c0_39, %c0_40] : memref<9x8x32xf32, #tpu.memory_space<vmem>>, vector<1x8x32xf32>
    %62 = vector.shape_cast %61 : vector<1x8x32xf32> to vector<8x32xf32>
    %cst_41 = arith.constant dense<0.000000e+00> : vector<8x512xf32>
    %63 = tpu.matmul %62, %60, %cst_41 {dimension_numbers = #tpu.dot_dimension_numbers<[1], [0], [0], [1], [0, 0, 1, 1], [], []>} : vector<8x32xf32>, vector<32x512xf32>, vector<8x512xf32> -> vector<8x512xf32>
    %c8_42 = arith.constant 8 : index
    %c0_43 = arith.constant 0 : index
    %64 = vector.load %arg2[%c8_42, %c0_43] : memref<9x512xf32, #tpu.memory_space<vmem>>, vector<1x512xf32>
    %65 = vector.broadcast %64 : vector<1x512xf32> to vector<8x512xf32>
    %66 = arith.mulf %63, %65 : vector<8x512xf32>
    %67 = arith.addf %59, %66 : vector<8x512xf32>
    %c0_44 = arith.constant 0 : index
    %c0_45 = arith.constant 0 : index
    %68 = vector.load %arg4[%c0_44, %c0_45] : memref<8x1xf32, #tpu.memory_space<vmem>>, vector<8x1xf32>
    %69 = vector.broadcast %68 : vector<8x1xf32> to vector<8x512xf32>
    %70 = arith.addf %67, %69 : vector<8x512xf32>
    %c0_46 = arith.constant 0 : index
    %c0_47 = arith.constant 0 : index
    %71 = vector.load %arg5[%c0_46, %c0_47] : memref<8x512xf32, #tpu.memory_space<vmem>>, vector<8x512xf32>
    tpu.vector_store %arg5[%c0_46, %c0_47], %70 {strides = array<i32>} : memref<8x512xf32, #tpu.memory_space<vmem>>, vector<8x512xf32>,
    return
  }
  func.func @transform_0(%arg0: i32) -> (i32, i32) {
    %c0_i32 = arith.constant 0 : i32
    %c0_i32_0 = arith.constant 0 : i32
    return %c0_i32, %arg0 : i32, i32
  }
  func.func @transform_1(%arg0: i32) -> (i32, i32) {
    %c0_i32 = arith.constant 0 : i32
    %c0_i32_0 = arith.constant 0 : i32
    %c0_i32_1 = arith.constant 0 : i32
    return %c0_i32, %c0_i32_0 : i32, i32
  }
  func.func @transform_2(%arg0: i32) -> (i32, i32, i32) {
    %c0_i32 = arith.constant 0 : i32
    %c0_i32_0 = arith.constant 0 : i32
    %c0_i32_1 = arith.constant 0 : i32
    %c0_i32_2 = arith.constant 0 : i32
    return %c0_i32, %c0_i32_0, %c0_i32_1 : i32, i32, i32
  }
  func.func @transform_3(%arg0: i32) -> (i32, i32) {
    %c0_i32 = arith.constant 0 : i32
    %c0_i32_0 = arith.constant 0 : i32
    %c0_i32_1 = arith.constant 0 : i32
    return %c0_i32, %c0_i32_0 : i32, i32
  }
  func.func @transform_4(%arg0: i32) -> (i32, i32) {
    %c0_i32 = arith.constant 0 : i32
    %c0_i32_0 = arith.constant 0 : i32
    return %c0_i32, %arg0 : i32, i32
  }
}

</mosaic_0001>

<llo_original>
// kernel: depthwise_down.1
$region0: #{depthwise_down.1}
  #allocation0 [shape = 'u32[]', space=smem, size = 0x4, offset = 0x4, fixed_abs, tag = 'smem constant byte address 0x4 - core index']
  #allocation1 [shape = 'u32[72,128]{1,0:T(1,128)}', space=vmem, size = 0x9000, scoped, tag = 'internal scratch']
  %s0 = inlined_call_operand.vmem [shape: f32[32,512], index: 0, kind: input, shape index: {}]
  %s1 = inlined_call_operand.vmem [shape: f32[9,512], index: 1, kind: input, shape index: {}]
  %s2 = inlined_call_operand.vmem [shape: f32[9,8,32], index: 2, kind: input, shape index: {}]
  %s3 = inlined_call_operand.vmem [shape: f32[8,1], index: 3, kind: input, shape index: {}]
  %s4 = inlined_call_operand.vmem [shape: f32[8,512], index: 4, kind: output, shape index: {}]
  %s5 = sld [smem:[#allocation0]]
  $region26: #{depthwise_down.1} parent=0
    _
  %s7 = ssub.s32 1, %s5
  %s8 = scalar_select 0, %s7, %s5
  // Predicated region
  $region2: #{depthwise_down.1} parent=0 // pred_check
    _
  $region3: #{depthwise_down.1} parent=0 // pred_check_branch
    %10 = sbr.rel (0) target = $region5
  $region4: #{depthwise_down.1} parent=0 // pred_region
    _
  $region5: #{depthwise_down.1} parent=0 // pred_fallthru
    _
  // Predicated region
  $region6: #{depthwise_down.1} parent=0 // pred_check
    _
  $region7: #{depthwise_down.1} parent=0 // pred_check_branch
    %12 = sbr.rel (0) target = $region9
  $region8: #{depthwise_down.1} parent=0 // pred_region
    _
  $region9: #{depthwise_down.1} parent=0 // pred_fallthru
    _
  // Predicated region
  $region10: #{depthwise_down.1} parent=0 // pred_check
    _
  $region11: #{depthwise_down.1} parent=0 // pred_check_branch
    %14 = sbr.rel (0) target = $region13
  $region12: #{depthwise_down.1} parent=0 // pred_region
    _
  $region13: #{depthwise_down.1} parent=0 // pred_fallthru
    _
  // Predicated region
  $region14: #{depthwise_down.1} parent=0 // pred_check
    _
  $region15: #{depthwise_down.1} parent=0 // pred_check_branch
    %16 = sbr.rel (0) target = $region17
  $region16: #{depthwise_down.1} parent=0 // pred_region
    _
  $region17: #{depthwise_down.1} parent=0 // pred_fallthru
    _
  %v17 = vld [vmem:[%s0] sm:$0xff]
  %v18 = vld [vmem:[%s0 + $0x8] sm:$0xff]
  %v19 = vld [vmem:[%s0 + $0x10] sm:$0xff]
  %v20 = vld [vmem:[%s0 + $0x18] sm:$0xff]
  %v21 = vld [vmem:[%s0 + $0x20] sm:$0xff]
  %v22 = vld [vmem:[%s0 + $0x28] sm:$0xff]
  %v23 = vld [vmem:[%s0 + $0x30] sm:$0xff]
  %v24 = vld [vmem:[%s0 + $0x38] sm:$0xff]
  %v25 = vld [vmem:[%s0 + $0x40] sm:$0xff]
  %v26 = vld [vmem:[%s0 + $0x48] sm:$0xff]
  %v27 = vld [vmem:[%s0 + $0x50] sm:$0xff]
  %v28 = vld [vmem:[%s0 + $0x58] sm:$0xff]
  %v29 = vld [vmem:[%s0 + $0x60] sm:$0xff]
  %v30 = vld [vmem:[%s0 + $0x68] sm:$0xff]
  %v31 = vld [vmem:[%s0 + $0x70] sm:$0xff]
  %v32 = vld [vmem:[%s0 + $0x78] sm:$0xff]
  %s33 = scalar_lea.vmem %s2, 32
  %v34 = vld [vmem:[%s33] sm:$0xff]
  %35 = vrot.lane.b32.xlu0 %v17, 17
  %v36 = vpop.permute.xlu0 %35
  %37 = vrot.lane.b32.xlu0 %v21, 17
  %v38 = vpop.permute.xlu0 %37
  %39 = vrot.lane.b32.xlu0 %v25, 17
  %v40 = vpop.permute.xlu0 %39
  %41 = vrot.lane.b32.xlu0 %v29, 17
  %v42 = vpop.permute.xlu0 %41
  %43 = vrot.lane.b32.xlu0 %v18, 17
  %v44 = vpop.permute.xlu0 %43
  %45 = vrot.lane.b32.xlu0 %v22, 17
  %v46 = vpop.permute.xlu0 %45
  %47 = vrot.lane.b32.xlu0 %v26, 17
  %v48 = vpop.permute.xlu0 %47
  %49 = vrot.lane.b32.xlu0 %v30, 17
  %v50 = vpop.permute.xlu0 %49
  %51 = vrot.lane.b32.xlu0 %v19, 17
  %v52 = vpop.permute.xlu0 %51
  %53 = vrot.lane.b32.xlu0 %v23, 17
  %v54 = vpop.permute.xlu0 %53
  %55 = vrot.lane.b32.xlu0 %v27, 17
  %v56 = vpop.permute.xlu0 %55
  %57 = vrot.lane.b32.xlu0 %v31, 17
  %v58 = vpop.permute.xlu0 %57
  %59 = vrot.lane.b32.xlu0 %v20, 17
  %v60 = vpop.permute.xlu0 %59
  %61 = vrot.lane.b32.xlu0 %v24, 17
  %v62 = vpop.permute.xlu0 %61
  %63 = vrot.lane.b32.xlu0 %v28, 17
  %v64 = vpop.permute.xlu0 %63
  %65 = vrot.lane.b32.xlu0 %v32, 17
  %v66 = vpop.permute.xlu0 %65
  %v67 = vlaneseq
  %v68 = vand.u32 %v67, 127
  %vm69 = vcmp.lt.s32.totalorder %v68, 17
  %v70 = vsel %vm69, %v52, %v60
  %v71 = vsel %vm69, %v54, %v62
  %v72 = vsel %vm69, %v56, %v64
  %v73 = vsel %vm69, %v58, %v66
  %v74 = vsel %vm69, %v44, %v52
  %v75 = vsel %vm69, %v46, %v54
  %v76 = vsel %vm69, %v48, %v56
  %v77 = vsel %vm69, %v50, %v58
  %v78 = vsel %vm69, %v36, %v44
  %v79 = vsel %vm69, %v38, %v46
  %v80 = vsel %vm69, %v40, %v48
  %v81 = vsel %vm69, %v42, %v50
  %v82 = vsel %vm69, %v60, %v36
  %v83 = vsel %vm69, %v62, %v38
  %v84 = vsel %vm69, %v64, %v40
  %v85 = vsel %vm69, %v66, %v42
  %v86 = vld [vmem:[%s2] sm:$0xff]
  %vm87 = vcmask 261120
  %v89 = vsel %vm87, %v86, 0
  %91 = vmatpush.msra.mxu0 0.0
  %92 = vmatpush.msra.mxu0 0.0
  %93 = vmatpush.msra.mxu0 0.0
  %94 = vmatpush.msra.mxu0 0.0
  %95 = vmatpush.msra.mxu0 0.0
  %96 = vmatpush.msra.mxu0 0.0
  %97 = vmatpush.msra.mxu0 0.0
  %98 = vmatpush.msra.mxu0 0.0
  %99 = vmatpush.msra.mxu0 0.0
  %100 = vmatpush.msra.mxu0 0.0
  %101 = vmatpush.msra.mxu0 0.0
  %102 = vmatpush.msra.mxu0 0.0
  %103 = vmatpush.msra.mxu0 %v85
  %104 = vmatpush.msra.mxu0 %v84
  %105 = vmatpush.msra.mxu0 %v83
  %106 = vmatpush.msra.mxu0 %v82
  %107 = vmatmul.f32.gmra.mxu0 %v89
  %v108 = vpop.f32.mrf.mxu0
  %v109 = vadd.f32 0.0, %v108
  %110 = vdwg.mxu0
  %111 = vmatpush.msra.mxu0 0.0
  %112 = vmatpush.msra.mxu0 0.0
  %113 = vmatpush.msra.mxu0 0.0
  %114 = vmatpush.msra.mxu0 0.0
  %115 = vmatpush.msra.mxu0 0.0
  %116 = vmatpush.msra.mxu0 0.0
  %117 = vmatpush.msra.mxu0 0.0
  %118 = vmatpush.msra.mxu0 0.0
  %119 = vmatpush.msra.mxu0 0.0
  %120 = vmatpush.msra.mxu0 0.0
  %121 = vmatpush.msra.mxu0 0.0
  %122 = vmatpush.msra.mxu0 0.0
  %123 = vmatpush.msra.mxu0 %v81
  %124 = vmatpush.msra.mxu0 %v80
  %125 = vmatpush.msra.mxu0 %v79
  %126 = vmatpush.msra.mxu0 %v78
  %127 = vmatmul.f32.gmra.mxu0 %v89
  %v128 = vpop.f32.mrf.mxu0
  %v129 = vadd.f32 0.0, %v128
  %130 = vdwg.mxu0
  %131 = vmatpush.msra.mxu0 0.0
  %132 = vmatpush.msra.mxu0 0.0
  %133 = vmatpush.msra.mxu0 0.0
  %134 = vmatpush.msra.mxu0 0.0
  %135 = vmatpush.msra.mxu0 0.0
  %136 = vmatpush.msra.mxu0 0.0
  %137 = vmatpush.msra.mxu0 0.0
  %138 = vmatpush.msra.mxu0 0.0
  %139 = vmatpush.msra.mxu0 0.0
  %140 = vmatpush.msra.mxu0 0.0
  %141 = vmatpush.msra.mxu0 0.0
  %142 = vmatpush.msra.mxu0 0.0
  %143 = vmatpush.msra.mxu0 %v77
  %144 = vmatpush.msra.mxu0 %v76
  %145 = vmatpush.msra.mxu0 %v75
  %146 = vmatpush.msra.mxu0 %v74
  %147 = vmatmul.f32.gmra.mxu0 %v89
  %v148 = vpop.f32.mrf.mxu0
  %v149 = vadd.f32 0.0, %v148
  %150 = vdwg.mxu0
  %151 = vmatpush.msra.mxu0 0.0
  %152 = vmatpush.msra.mxu0 0.0
  %153 = vmatpush.msra.mxu0 0.0
  %154 = vmatpush.msra.mxu0 0.0
  %155 = vmatpush.msra.mxu0 0.0
  %156 = vmatpush.msra.mxu0 0.0
  %157 = vmatpush.msra.mxu0 0.0
  %158 = vmatpush.msra.mxu0 0.0
  %159 = vmatpush.msra.mxu0 0.0
  %160 = vmatpush.msra.mxu0 0.0
  %161 = vmatpush.msra.mxu0 0.0
  %162 = vmatpush.msra.mxu0 0.0
  %163 = vmatpush.msra.mxu0 %v73
  %164 = vmatpush.msra.mxu0 %v72
  %165 = vmatpush.msra.mxu0 %v71
  %166 = vmatpush.msra.mxu0 %v70
  %167 = vmatmul.f32.gmra.mxu0 %v89
  %v168 = vpop.f32.mrf.mxu0
  %v169 = vadd.f32 0.0, %v168
  %170 = vdwg.mxu0
  %v171 = vld [vmem:[%s1] ss:$8 sm:$0xf]
  %v173 = vperm.slane %v171, 0
  %v174 = vperm.slane %v171, 1
  %v175 = vperm.slane %v171, 2
  %v176 = vperm.slane %v171, 3
  %v181 = vmul.f32 %v109, %v173
  %v182 = vmul.f32 %v129, %v174
  %v183 = vmul.f32 %v149, %v175
  %v184 = vmul.f32 %v169, %v176
  %v186 = vsel %vm87, %v34, 0
  %188 = vmatpush.msra.mxu0 0.0
  %189 = vmatpush.msra.mxu0 0.0
  %190 = vmatpush.msra.mxu0 0.0
  %191 = vmatpush.msra.mxu0 0.0
  %192 = vmatpush.msra.mxu0 0.0
  %193 = vmatpush.msra.mxu0 0.0
  %194 = vmatpush.msra.mxu0 0.0
  %195 = vmatpush.msra.mxu0 0.0
  %196 = vmatpush.msra.mxu0 0.0
  %197 = vmatpush.msra.mxu0 0.0
  %198 = vmatpush.msra.mxu0 0.0
  %199 = vmatpush.msra.mxu0 0.0
  %200 = vmatpush.msra.mxu0 %v29
  %201 = vmatpush.msra.mxu0 %v25
  %202 = vmatpush.msra.mxu0 %v21
  %203 = vmatpush.msra.mxu0 %v17
  %204 = vmatmul.f32.gmra.mxu0 %v186
  %v205 = vpop.f32.mrf.mxu0
  %v206 = vadd.f32 %v181, %v205
  %207 = vdwg.mxu0
  %208 = vmatpush.msra.mxu0 0.0
  %209 = vmatpush.msra.mxu0 0.0
  %210 = vmatpush.msra.mxu0 0.0
  %211 = vmatpush.msra.mxu0 0.0
  %212 = vmatpush.msra.mxu0 0.0
  %213 = vmatpush.msra.mxu0 0.0
  %214 = vmatpush.msra.mxu0 0.0
  %215 = vmatpush.msra.mxu0 0.0
  %216 = vmatpush.msra.mxu0 0.0
  %217 = vmatpush.msra.mxu0 0.0
  %218 = vmatpush.msra.mxu0 0.0
  %219 = vmatpush.msra.mxu0 0.0
  %220 = vmatpush.msra.mxu0 %v30
  %221 = vmatpush.msra.mxu0 %v26
  %222 = vmatpush.msra.mxu0 %v22
  %223 = vmatpush.msra.mxu0 %v18
  %224 = vmatmul.f32.gmra.mxu0 %v186
  %v225 = vpop.f32.mrf.mxu0
  %v226 = vadd.f32 %v182, %v225
  %227 = vdwg.mxu0
  %228 = vmatpush.msra.mxu0 0.0
  %229 = vmatpush.msra.mxu0 0.0
  %230 = vmatpush.msra.mxu0 0.0
  %231 = vmatpush.msra.mxu0 0.0
  %232 = vmatpush.msra.mxu0 0.0
  %233 = vmatpush.msra.mxu0 0.0
  %234 = vmatpush.msra.mxu0 0.0
  %235 = vmatpush.msra.mxu0 0.0
  %236 = vmatpush.msra.mxu0 0.0
  %237 = vmatpush.msra.mxu0 0.0
  %238 = vmatpush.msra.mxu0 0.0
  %239 = vmatpush.msra.mxu0 0.0
  %240 = vmatpush.msra.mxu0 %v31
  %241 = vmatpush.msra.mxu0 %v27
  %242 = vmatpush.msra.mxu0 %v23
  %243 = vmatpush.msra.mxu0 %v19
  %244 = vmatmul.f32.gmra.mxu0 %v186
  %v245 = vpop.f32.mrf.mxu0
  %v246 = vadd.f32 %v183, %v245
  %247 = vdwg.mxu0
  %248 = vmatpush.msra.mxu0 0.0
  %249 = vmatpush.msra.mxu0 0.0
  %250 = vmatpush.msra.mxu0 0.0
  %251 = vmatpush.msra.mxu0 0.0
  %252 = vmatpush.msra.mxu0 0.0
  %253 = vmatpush.msra.mxu0 0.0
  %254 = vmatpush.msra.mxu0 0.0
  %255 = vmatpush.msra.mxu0 0.0
  %256 = vmatpush.msra.mxu0 0.0
  %257 = vmatpush.msra.mxu0 0.0
  %258 = vmatpush.msra.mxu0 0.0
  %259 = vmatpush.msra.mxu0 0.0
  %260 = vmatpush.msra.mxu0 %v32
  %261 = vmatpush.msra.mxu0 %v28
  %262 = vmatpush.msra.mxu0 %v24
  %263 = vmatpush.msra.mxu0 %v20
  %264 = vmatmul.f32.gmra.mxu0 %v186
  %v265 = vpop.f32.mrf.mxu0
  %v266 = vadd.f32 %v184, %v265
  %267 = vdwg.mxu0
  %268 = vrot.lane.b32.xlu0 %v17, 16
  %v269 = vpop.permute.xlu0 %268
  %270 = vrot.lane.b32.xlu0 %v21, 16
  %v271 = vpop.permute.xlu0 %270
  %272 = vrot.lane.b32.xlu0 %v25, 16
  %v273 = vpop.permute.xlu0 %272
  %274 = vrot.lane.b32.xlu0 %v29, 16
  %v275 = vpop.permute.xlu0 %274
  %276 = vrot.lane.b32.xlu0 %v18, 16
  %v277 = vpop.permute.xlu0 %276
  %278 = vrot.lane.b32.xlu0 %v22, 16
  %v279 = vpop.permute.xlu0 %278
  %280 = vrot.lane.b32.xlu0 %v26, 16
  %v281 = vpop.permute.xlu0 %280
  %282 = vrot.lane.b32.xlu0 %v30, 16
  %v283 = vpop.permute.xlu0 %282
  %284 = vrot.lane.b32.xlu0 %v19, 16
  %v285 = vpop.permute.xlu0 %284
  %286 = vrot.lane.b32.xlu0 %v23, 16
  %v287 = vpop.permute.xlu0 %286
  %288 = vrot.lane.b32.xlu0 %v27, 16
  %v289 = vpop.permute.xlu0 %288
  %290 = vrot.lane.b32.xlu0 %v31, 16
  %v291 = vpop.permute.xlu0 %290
  %292 = vrot.lane.b32.xlu0 %v20, 16
  %v293 = vpop.permute.xlu0 %292
  %294 = vrot.lane.b32.xlu0 %v24, 16
  %v295 = vpop.permute.xlu0 %294
  %296 = vrot.lane.b32.xlu0 %v28, 16
  %v297 = vpop.permute.xlu0 %296
  %298 = vrot.lane.b32.xlu0 %v32, 16
  %v299 = vpop.permute.xlu0 %298
  %vm300 = vcmp.lt.s32.totalorder %v68, 16
  %v301 = vsel %vm300, %v285, %v293
  %v302 = vsel %vm300, %v287, %v295
  %v303 = vsel %vm300, %v289, %v297
  %v304 = vsel %vm300, %v291, %v299
  %v305 = vsel %vm300, %v277, %v285
  %v306 = vsel %vm300, %v279, %v287
  %v307 = vsel %vm300, %v281, %v289
  %v308 = vsel %vm300, %v283, %v291
  %v309 = vsel %vm300, %v269, %v277
  %v310 = vsel %vm300, %v271, %v279
  %v311 = vsel %vm300, %v273, %v281
  %v312 = vsel %vm300, %v275, %v283
  %v313 = vsel %vm300, %v293, %v269
  %v314 = vsel %vm300, %v295, %v271
  %v315 = vsel %vm300, %v297, %v273
  %v316 = vsel %vm300, %v299, %v275
  %s317 = scalar_lea.vmem %s2, 8
  %v318 = vld [vmem:[%s317] sm:$0xff]
  %v320 = vsel %vm87, %v318, 0
  %322 = vmatpush.msra.mxu0 0.0
  %323 = vmatpush.msra.mxu0 0.0
  %324 = vmatpush.msra.mxu0 0.0
  %325 = vmatpush.msra.mxu0 0.0
  %326 = vmatpush.msra.mxu0 0.0
  %327 = vmatpush.msra.mxu0 0.0
  %328 = vmatpush.msra.mxu0 0.0
  %329 = vmatpush.msra.mxu0 0.0
  %330 = vmatpush.msra.mxu0 0.0
  %331 = vmatpush.msra.mxu0 0.0
  %332 = vmatpush.msra.mxu0 0.0
  %333 = vmatpush.msra.mxu0 0.0
  %334 = vmatpush.msra.mxu0 %v316
  %335 = vmatpush.msra.mxu0 %v315
  %336 = vmatpush.msra.mxu0 %v314
  %337 = vmatpush.msra.mxu0 %v313
  %338 = vmatmul.f32.gmra.mxu0 %v320
  %v339 = vpop.f32.mrf.mxu0
  %v340 = vadd.f32 0.0, %v339
  %341 = vdwg.mxu0
  %342 = vmatpush.msra.mxu0 0.0
  %343 = vmatpush.msra.mxu0 0.0
  %344 = vmatpush.msra.mxu0 0.0
  %345 = vmatpush.msra.mxu0 0.0
  %346 = vmatpush.msra.mxu0 0.0
  %347 = vmatpush.msra.mxu0 0.0
  %348 = vmatpush.msra.mxu0 0.0
  %349 = vmatpush.msra.mxu0 0.0
  %350 = vmatpush.msra.mxu0 0.0
  %351 = vmatpush.msra.mxu0 0.0
  %352 = vmatpush.msra.mxu0 0.0
  %353 = vmatpush.msra.mxu0 0.0
  %354 = vmatpush.msra.mxu0 %v312
  %355 = vmatpush.msra.mxu0 %v311
  %356 = vmatpush.msra.mxu0 %v310
  %357 = vmatpush.msra.mxu0 %v309
  %358 = vmatmul.f32.gmra.mxu0 %v320
  %v359 = vpop.f32.mrf.mxu0
  %v360 = vadd.f32 0.0, %v359
  %361 = vdwg.mxu0
  %362 = vmatpush.msra.mxu0 0.0
  %363 = vmatpush.msra.mxu0 0.0
  %364 = vmatpush.msra.mxu0 0.0
  %365 = vmatpush.msra.mxu0 0.0
  %366 = vmatpush.msra.mxu0 0.0
  %367 = vmatpush.msra.mxu0 0.0
  %368 = vmatpush.msra.mxu0 0.0
  %369 = vmatpush.msra.mxu0 0.0
  %370 = vmatpush.msra.mxu0 0.0
  %371 = vmatpush.msra.mxu0 0.0
  %372 = vmatpush.msra.mxu0 0.0
  %373 = vmatpush.msra.mxu0 0.0
  %374 = vmatpush.msra.mxu0 %v308
  %375 = vmatpush.msra.mxu0 %v307
  %376 = vmatpush.msra.mxu0 %v306
  %377 = vmatpush.msra.mxu0 %v305
  %378 = vmatmul.f32.gmra.mxu0 %v320
  %v379 = vpop.f32.mrf.mxu0
  %v380 = vadd.f32 0.0, %v379
  %381 = vdwg.mxu0
  %382 = vmatpush.msra.mxu0 0.0
  %383 = vmatpush.msra.mxu0 0.0
  %384 = vmatpush.msra.mxu0 0.0
  %385 = vmatpush.msra.mxu0 0.0
  %386 = vmatpush.msra.mxu0 0.0
  %387 = vmatpush.msra.mxu0 0.0
  %388 = vmatpush.msra.mxu0 0.0
  %389 = vmatpush.msra.mxu0 0.0
  %390 = vmatpush.msra.mxu0 0.0
  %391 = vmatpush.msra.mxu0 0.0
  %392 = vmatpush.msra.mxu0 0.0
  %393 = vmatpush.msra.mxu0 0.0
  %394 = vmatpush.msra.mxu0 %v304
  %395 = vmatpush.msra.mxu0 %v303
  %396 = vmatpush.msra.mxu0 %v302
  %397 = vmatpush.msra.mxu0 %v301
  %398 = vmatmul.f32.gmra.mxu0 %v320
  %v399 = vpop.f32.mrf.mxu0
  %v400 = vadd.f32 0.0, %v399
  %401 = vdwg.mxu0
  %s402 = scalar_lea.vmem %s1, 1
  %v403 = vld [vmem:[%s402] ss:$8 sm:$0xf]
  %v405 = vperm.slane %v403, 0
  %v406 = vperm.slane %v403, 1
  %v407 = vperm.slane %v403, 2
  %v408 = vperm.slane %v403, 3
  %v413 = vmul.f32 %v340, %v405
  %v414 = vmul.f32 %v360, %v406
  %v415 = vmul.f32 %v380, %v407
  %v416 = vmul.f32 %v400, %v408
  %v417 = vadd.f32 %v206, %v413
  %v418 = vadd.f32 %v226, %v414
  %v419 = vadd.f32 %v246, %v415
  %v420 = vadd.f32 %v266, %v416
  %421 = vrot.lane.b32.xlu0 %v17, 15
  %v422 = vpop.permute.xlu0 %421
  %423 = vrot.lane.b32.xlu0 %v21, 15
  %v424 = vpop.permute.xlu0 %423
  %425 = vrot.lane.b32.xlu0 %v25, 15
  %v426 = vpop.permute.xlu0 %425
  %427 = vrot.lane.b32.xlu0 %v29, 15
  %v428 = vpop.permute.xlu0 %427
  %429 = vrot.lane.b32.xlu0 %v18, 15
  %v430 = vpop.permute.xlu0 %429
  %431 = vrot.lane.b32.xlu0 %v22, 15
  %v432 = vpop.permute.xlu0 %431
  %433 = vrot.lane.b32.xlu0 %v26, 15
  %v434 = vpop.permute.xlu0 %433
  %435 = vrot.lane.b32.xlu0 %v30, 15
  %v436 = vpop.permute.xlu0 %435
  %437 = vrot.lane.b32.xlu0 %v19, 15
  %v438 = vpop.permute.xlu0 %437
  %439 = vrot.lane.b32.xlu0 %v23, 15
  %v440 = vpop.permute.xlu0 %439
  %441 = vrot.lane.b32.xlu0 %v27, 15
  %v442 = vpop.permute.xlu0 %441
  %443 = vrot.lane.b32.xlu0 %v31, 15
  %v444 = vpop.permute.xlu0 %443
  %445 = vrot.lane.b32.xlu0 %v20, 15
  %v446 = vpop.permute.xlu0 %445
  %447 = vrot.lane.b32.xlu0 %v24, 15
  %v448 = vpop.permute.xlu0 %447
  %449 = vrot.lane.b32.xlu0 %v28, 15
  %v450 = vpop.permute.xlu0 %449
  %451 = vrot.lane.b32.xlu0 %v32, 15
  %v452 = vpop.permute.xlu0 %451
  %vm453 = vcmp.lt.s32.totalorder %v68, 15
  %v454 = vsel %vm453, %v438, %v446
  %v455 = vsel %vm453, %v440, %v448
  %v456 = vsel %vm453, %v442, %v450
  %v457 = vsel %vm453, %v444, %v452
  %v458 = vsel %vm453, %v430, %v438
  %v459 = vsel %vm453, %v432, %v440
  %v460 = vsel %vm453, %v434, %v442
  %v461 = vsel %vm453, %v436, %v444
  %v462 = vsel %vm453, %v422, %v430
  %v463 = vsel %vm453, %v424, %v432
  %v464 = vsel %vm453, %v426, %v434
  %v465 = vsel %vm453, %v428, %v436
  %v466 = vsel %vm453, %v446, %v422
  %v467 = vsel %vm453, %v448, %v424
  %v468 = vsel %vm453, %v450, %v426
  %v469 = vsel %vm453, %v452, %v428
  %s470 = scalar_lea.vmem %s2, 16
  %v471 = vld [vmem:[%s470] sm:$0xff]
  %v473 = vsel %vm87, %v471, 0
  %475 = vmatpush.msra.mxu0 0.0
  %476 = vmatpush.msra.mxu0 0.0
  %477 = vmatpush.msra.mxu0 0.0
  %478 = vmatpush.msra.mxu0 0.0
  %479 = vmatpush.msra.mxu0 0.0
  %480 = vmatpush.msra.mxu0 0.0
  %481 = vmatpush.msra.mxu0 0.0
  %482 = vmatpush.msra.mxu0 0.0
  %483 = vmatpush.msra.mxu0 0.0
  %484 = vmatpush.msra.mxu0 0.0
  %485 = vmatpush.msra.mxu0 0.0
  %486 = vmatpush.msra.mxu0 0.0
  %487 = vmatpush.msra.mxu0 %v469
  %488 = vmatpush.msra.mxu0 %v468
  %489 = vmatpush.msra.mxu0 %v467
  %490 = vmatpush.msra.mxu0 %v466
  %491 = vmatmul.f32.gmra.mxu0 %v473
  %v492 = vpop.f32.mrf.mxu0
  %v493 = vadd.f32 0.0, %v492
  %494 = vdwg.mxu0
  %495 = vmatpush.msra.mxu0 0.0
  %496 = vmatpush.msra.mxu0 0.0
  %497 = vmatpush.msra.mxu0 0.0
  %498 = vmatpush.msra.mxu0 0.0
  %499 = vmatpush.msra.mxu0 0.0
  %500 = vmatpush.msra.mxu0 0.0
  %501 = vmatpush.msra.mxu0 0.0
  %502 = vmatpush.msra.mxu0 0.0
  %503 = vmatpush.msra.mxu0 0.0
  %504 = vmatpush.msra.mxu0 0.0
  %505 = vmatpush.msra.mxu0 0.0
  %506 = vmatpush.msra.mxu0 0.0
  %507 = vmatpush.msra.mxu0 %v465
  %508 = vmatpush.msra.mxu0 %v464
  %509 = vmatpush.msra.mxu0 %v463
  %510 = vmatpush.msra.mxu0 %v462
  %511 = vmatmul.f32.gmra.mxu0 %v473
  %v512 = vpop.f32.mrf.mxu0
  %v513 = vadd.f32 0.0, %v512
  %514 = vdwg.mxu0
  %515 = vmatpush.msra.mxu0 0.0
  %516 = vmatpush.msra.mxu0 0.0
  %517 = vmatpush.msra.mxu0 0.0
  %518 = vmatpush.msra.mxu0 0.0
  %519 = vmatpush.msra.mxu0 0.0
  %520 = vmatpush.msra.mxu0 0.0
  %521 = vmatpush.msra.mxu0 0.0
  %522 = vmatpush.msra.mxu0 0.0
  %523 = vmatpush.msra.mxu0 0.0
  %524 = vmatpush.msra.mxu0 0.0
  %525 = vmatpush.msra.mxu0 0.0
  %526 = vmatpush.msra.mxu0 0.0
  %527 = vmatpush.msra.mxu0 %v461
  %528 = vmatpush.msra.mxu0 %v460
  %529 = vmatpush.msra.mxu0 %v459
  %530 = vmatpush.msra.mxu0 %v458
  %531 = vmatmul.f32.gmra.mxu0 %v473
  %v532 = vpop.f32.mrf.mxu0
  %v533 = vadd.f32 0.0, %v532
  %534 = vdwg.mxu0
  %535 = vmatpush.msra.mxu0 0.0
  %536 = vmatpush.msra.mxu0 0.0
  %537 = vmatpush.msra.mxu0 0.0
  %538 = vmatpush.msra.mxu0 0.0
  %539 = vmatpush.msra.mxu0 0.0
  %540 = vmatpush.msra.mxu0 0.0
  %541 = vmatpush.msra.mxu0 0.0
  %542 = vmatpush.msra.mxu0 0.0
  %543 = vmatpush.msra.mxu0 0.0
  %544 = vmatpush.msra.mxu0 0.0
  %545 = vmatpush.msra.mxu0 0.0
  %546 = vmatpush.msra.mxu0 0.0
  %547 = vmatpush.msra.mxu0 %v457
  %548 = vmatpush.msra.mxu0 %v456
  %549 = vmatpush.msra.mxu0 %v455
  %550 = vmatpush.msra.mxu0 %v454
  %551 = vmatmul.f32.gmra.mxu0 %v473
  %v552 = vpop.f32.mrf.mxu0
  %v553 = vadd.f32 0.0, %v552
  %554 = vdwg.mxu0
  %s555 = scalar_lea.vmem %s1, 2
  %v556 = vld [vmem:[%s555] ss:$8 sm:$0xf]
  %v558 = vperm.slane %v556, 0
  %v559 = vperm.slane %v556, 1
  %v560 = vperm.slane %v556, 2
  %v561 = vperm.slane %v556, 3
  %v566 = vmul.f32 %v493, %v558
  %v567 = vmul.f32 %v513, %v559
  %v568 = vmul.f32 %v533, %v560
  %v569 = vmul.f32 %v553, %v561
  %v570 = vadd.f32 %v417, %v566
  %v571 = vadd.f32 %v418, %v567
  %v572 = vadd.f32 %v419, %v568
  %v573 = vadd.f32 %v420, %v569
  %574 = vrot.lane.b32.xlu0 %v17, 1
  %v575 = vpop.permute.xlu0 %574
  %576 = vrot.lane.b32.xlu0 %v21, 1
  %v577 = vpop.permute.xlu0 %576
  %578 = vrot.lane.b32.xlu0 %v25, 1
  %v579 = vpop.permute.xlu0 %578
  %580 = vrot.lane.b32.xlu0 %v29, 1
  %v581 = vpop.permute.xlu0 %580
  %582 = vrot.lane.b32.xlu0 %v18, 1
  %v583 = vpop.permute.xlu0 %582
  %584 = vrot.lane.b32.xlu0 %v22, 1
  %v585 = vpop.permute.xlu0 %584
  %586 = vrot.lane.b32.xlu0 %v26, 1
  %v587 = vpop.permute.xlu0 %586
  %588 = vrot.lane.b32.xlu0 %v30, 1
  %v589 = vpop.permute.xlu0 %588
  %590 = vrot.lane.b32.xlu0 %v19, 1
  %v591 = vpop.permute.xlu0 %590
  %592 = vrot.lane.b32.xlu0 %v23, 1
  %v593 = vpop.permute.xlu0 %592
  %594 = vrot.lane.b32.xlu0 %v27, 1
  %v595 = vpop.permute.xlu0 %594
  %596 = vrot.lane.b32.xlu0 %v31, 1
  %v597 = vpop.permute.xlu0 %596
  %598 = vrot.lane.b32.xlu0 %v20, 1
  %v599 = vpop.permute.xlu0 %598
  %600 = vrot.lane.b32.xlu0 %v24, 1
  %v601 = vpop.permute.xlu0 %600
  %602 = vrot.lane.b32.xlu0 %v28, 1
  %v603 = vpop.permute.xlu0 %602
  %604 = vrot.lane.b32.xlu0 %v32, 1
  %v605 = vpop.permute.xlu0 %604
  %vm606 = vcmp.lt.s32.totalorder %v68, 1
  %v607 = vsel %vm606, %v591, %v599
  %v608 = vsel %vm606, %v593, %v601
  %v609 = vsel %vm606, %v595, %v603
  %v610 = vsel %vm606, %v597, %v605
  %v611 = vsel %vm606, %v583, %v591
  %v612 = vsel %vm606, %v585, %v593
  %v613 = vsel %vm606, %v587, %v595
  %v614 = vsel %vm606, %v589, %v597
  %v615 = vsel %vm606, %v575, %v583
  %v616 = vsel %vm606, %v577, %v585
  %v617 = vsel %vm606, %v579, %v587
  %v618 = vsel %vm606, %v581, %v589
  %v619 = vsel %vm606, %v599, %v575
  %v620 = vsel %vm606, %v601, %v577
  %v621 = vsel %vm606, %v603, %v579
  %v622 = vsel %vm606, %v605, %v581
  %s623 = scalar_lea.vmem %s2, 24
  %v624 = vld [vmem:[%s623] sm:$0xff]
  %v626 = vsel %vm87, %v624, 0
  %628 = vmatpush.msra.mxu0 0.0
  %629 = vmatpush.msra.mxu0 0.0
  %630 = vmatpush.msra.mxu0 0.0
  %631 = vmatpush.msra.mxu0 0.0
  %632 = vmatpush.msra.mxu0 0.0
  %633 = vmatpush.msra.mxu0 0.0
  %634 = vmatpush.msra.mxu0 0.0
  %635 = vmatpush.msra.mxu0 0.0
  %636 = vmatpush.msra.mxu0 0.0
  %637 = vmatpush.msra.mxu0 0.0
  %638 = vmatpush.msra.mxu0 0.0
  %639 = vmatpush.msra.mxu0 0.0
  %640 = vmatpush.msra.mxu0 %v622
  %641 = vmatpush.msra.mxu0 %v621
  %642 = vmatpush.msra.mxu0 %v620
  %643 = vmatpush.msra.mxu0 %v619
  %644 = vmatmul.f32.gmra.mxu0 %v626
  %v645 = vpop.f32.mrf.mxu0
  %v646 = vadd.f32 0.0, %v645
  %647 = vdwg.mxu0
  %648 = vmatpush.msra.mxu0 0.0
  %649 = vmatpush.msra.mxu0 0.0
  %650 = vmatpush.msra.mxu0 0.0
  %651 = vmatpush.msra.mxu0 0.0
  %652 = vmatpush.msra.mxu0 0.0
  %653 = vmatpush.msra.mxu0 0.0
  %654 = vmatpush.msra.mxu0 0.0
  %655 = vmatpush.msra.mxu0 0.0
  %656 = vmatpush.msra.mxu0 0.0
  %657 = vmatpush.msra.mxu0 0.0
  %658 = vmatpush.msra.mxu0 0.0
  %659 = vmatpush.msra.mxu0 0.0
  %660 = vmatpush.msra.mxu0 %v618
  %661 = vmatpush.msra.mxu0 %v617
  %662 = vmatpush.msra.mxu0 %v616
  %663 = vmatpush.msra.mxu0 %v615
  %664 = vmatmul.f32.gmra.mxu0 %v626
  %v665 = vpop.f32.mrf.mxu0
  %v666 = vadd.f32 0.0, %v665
  %667 = vdwg.mxu0
  %668 = vmatpush.msra.mxu0 0.0
  %669 = vmatpush.msra.mxu0 0.0
  %670 = vmatpush.msra.mxu0 0.0
  %671 = vmatpush.msra.mxu0 0.0
  %672 = vmatpush.msra.mxu0 0.0
  %673 = vmatpush.msra.mxu0 0.0
  %674 = vmatpush.msra.mxu0 0.0
  %675 = vmatpush.msra.mxu0 0.0
  %676 = vmatpush.msra.mxu0 0.0
  %677 = vmatpush.msra.mxu0 0.0
  %678 = vmatpush.msra.mxu0 0.0
  %679 = vmatpush.msra.mxu0 0.0
  %680 = vmatpush.msra.mxu0 %v614
  %681 = vmatpush.msra.mxu0 %v613
  %682 = vmatpush.msra.mxu0 %v612
  %683 = vmatpush.msra.mxu0 %v611
  %684 = vmatmul.f32.gmra.mxu0 %v626
  %v685 = vpop.f32.mrf.mxu0
  %v686 = vadd.f32 0.0, %v685
  %687 = vdwg.mxu0
  %688 = vmatpush.msra.mxu0 0.0
  %689 = vmatpush.msra.mxu0 0.0
  %690 = vmatpush.msra.mxu0 0.0
  %691 = vmatpush.msra.mxu0 0.0
  %692 = vmatpush.msra.mxu0 0.0
  %693 = vmatpush.msra.mxu0 0.0
  %694 = vmatpush.msra.mxu0 0.0
  %695 = vmatpush.msra.mxu0 0.0
  %696 = vmatpush.msra.mxu0 0.0
  %697 = vmatpush.msra.mxu0 0.0
  %698 = vmatpush.msra.mxu0 0.0
  %699 = vmatpush.msra.mxu0 0.0
  %700 = vmatpush.msra.mxu0 %v610
  %701 = vmatpush.msra.mxu0 %v609
  %702 = vmatpush.msra.mxu0 %v608
  %703 = vmatpush.msra.mxu0 %v607
  %704 = vmatmul.f32.gmra.mxu0 %v626
  %v705 = vpop.f32.mrf.mxu0
  %v706 = vadd.f32 0.0, %v705
  %707 = vdwg.mxu0
  %s708 = scalar_lea.vmem %s1, 3
  %v709 = vld [vmem:[%s708] ss:$8 sm:$0xf]
  %v711 = vperm.slane %v709, 0
  %v712 = vperm.slane %v709, 1
  %v713 = vperm.slane %v709, 2
  %v714 = vperm.slane %v709, 3
  %v719 = vmul.f32 %v646, %v711
  %v720 = vmul.f32 %v666, %v712
  %v721 = vmul.f32 %v686, %v713
  %v722 = vmul.f32 %v706, %v714
  %v723 = vadd.f32 %v570, %v719
  %v724 = vadd.f32 %v571, %v720
  %v725 = vadd.f32 %v572, %v721
  %v726 = vadd.f32 %v573, %v722
  %727 = vrot.lane.b32.xlu0 %v17, 127
  %v728 = vpop.permute.xlu0 %727
  %729 = vrot.lane.b32.xlu0 %v21, 127
  %v730 = vpop.permute.xlu0 %729
  %731 = vrot.lane.b32.xlu0 %v25, 127
  %v732 = vpop.permute.xlu0 %731
  %733 = vrot.lane.b32.xlu0 %v29, 127
  %v734 = vpop.permute.xlu0 %733
  %735 = vrot.lane.b32.xlu0 %v18, 127
  %v736 = vpop.permute.xlu0 %735
  %737 = vrot.lane.b32.xlu0 %v22, 127
  %v738 = vpop.permute.xlu0 %737
  %739 = vrot.lane.b32.xlu0 %v26, 127
  %v740 = vpop.permute.xlu0 %739
  %741 = vrot.lane.b32.xlu0 %v30, 127
  %v742 = vpop.permute.xlu0 %741
  %743 = vrot.lane.b32.xlu0 %v19, 127
  %v744 = vpop.permute.xlu0 %743
  %745 = vrot.lane.b32.xlu0 %v23, 127
  %v746 = vpop.permute.xlu0 %745
  %747 = vrot.lane.b32.xlu0 %v27, 127
  %v748 = vpop.permute.xlu0 %747
  %749 = vrot.lane.b32.xlu0 %v31, 127
  %v750 = vpop.permute.xlu0 %749
  %751 = vrot.lane.b32.xlu0 %v20, 127
  %v752 = vpop.permute.xlu0 %751
  %753 = vrot.lane.b32.xlu0 %v24, 127
  %v754 = vpop.permute.xlu0 %753
  %755 = vrot.lane.b32.xlu0 %v28, 127
  %v756 = vpop.permute.xlu0 %755
  %757 = vrot.lane.b32.xlu0 %v32, 127
  %v758 = vpop.permute.xlu0 %757
  %vm759 = vcmp.lt.s32.totalorder %v68, 127
  %v760 = vsel %vm759, %v744, %v752
  %v761 = vsel %vm759, %v746, %v754
  %v762 = vsel %vm759, %v748, %v756
  %v763 = vsel %vm759, %v750, %v758
  %v764 = vsel %vm759, %v736, %v744
  %v765 = vsel %vm759, %v738, %v746
  %v766 = vsel %vm759, %v740, %v748
  %v767 = vsel %vm759, %v742, %v750
  %v768 = vsel %vm759, %v728, %v736
  %v769 = vsel %vm759, %v730, %v738
  %v770 = vsel %vm759, %v732, %v740
  %v771 = vsel %vm759, %v734, %v742
  %v772 = vsel %vm759, %v752, %v728
  %v773 = vsel %vm759, %v754, %v730
  %v774 = vsel %vm759, %v756, %v732
  %v775 = vsel %vm759, %v758, %v734
  %s776 = scalar_lea.vmem %s2, 40
  %v777 = vld [vmem:[%s776] sm:$0xff]
  %v779 = vsel %vm87, %v777, 0
  %781 = vmatpush.msra.mxu0 0.0
  %782 = vmatpush.msra.mxu0 0.0
  %783 = vmatpush.msra.mxu0 0.0
  %784 = vmatpush.msra.mxu0 0.0
  %785 = vmatpush.msra.mxu0 0.0
  %786 = vmatpush.msra.mxu0 0.0
  %787 = vmatpush.msra.mxu0 0.0
  %788 = vmatpush.msra.mxu0 0.0
  %789 = vmatpush.msra.mxu0 0.0
  %790 = vmatpush.msra.mxu0 0.0
  %791 = vmatpush.msra.mxu0 0.0
  %792 = vmatpush.msra.mxu0 0.0
  %793 = vmatpush.msra.mxu0 %v771
  %794 = vmatpush.msra.mxu0 %v770
  %795 = vmatpush.msra.mxu0 %v769
  %796 = vmatpush.msra.mxu0 %v768
  %797 = vmatmul.f32.gmra.mxu0 %v779
  %v798 = vpop.f32.mrf.mxu0
  %v799 = vadd.f32 0.0, %v798
  %800 = vdwg.mxu0
  %801 = vmatpush.msra.mxu0 0.0
  %802 = vmatpush.msra.mxu0 0.0
  %803 = vmatpush.msra.mxu0 0.0
  %804 = vmatpush.msra.mxu0 0.0
  %805 = vmatpush.msra.mxu0 0.0
  %806 = vmatpush.msra.mxu0 0.0
  %807 = vmatpush.msra.mxu0 0.0
  %808 = vmatpush.msra.mxu0 0.0
  %809 = vmatpush.msra.mxu0 0.0
  %810 = vmatpush.msra.mxu0 0.0
  %811 = vmatpush.msra.mxu0 0.0
  %812 = vmatpush.msra.mxu0 0.0
  %813 = vmatpush.msra.mxu0 %v767
  %814 = vmatpush.msra.mxu0 %v766
  %815 = vmatpush.msra.mxu0 %v765
  %816 = vmatpush.msra.mxu0 %v764
  %817 = vmatmul.f32.gmra.mxu0 %v779
  %v818 = vpop.f32.mrf.mxu0
  %v819 = vadd.f32 0.0, %v818
  %820 = vdwg.mxu0
  %821 = vmatpush.msra.mxu0 0.0
  %822 = vmatpush.msra.mxu0 0.0
  %823 = vmatpush.msra.mxu0 0.0
  %824 = vmatpush.msra.mxu0 0.0
  %825 = vmatpush.msra.mxu0 0.0
  %826 = vmatpush.msra.mxu0 0.0
  %827 = vmatpush.msra.mxu0 0.0
  %828 = vmatpush.msra.mxu0 0.0
  %829 = vmatpush.msra.mxu0 0.0
  %830 = vmatpush.msra.mxu0 0.0
  %831 = vmatpush.msra.mxu0 0.0
  %832 = vmatpush.msra.mxu0 0.0
  %833 = vmatpush.msra.mxu0 %v763
  %834 = vmatpush.msra.mxu0 %v762
  %835 = vmatpush.msra.mxu0 %v761
  %836 = vmatpush.msra.mxu0 %v760
  %837 = vmatmul.f32.gmra.mxu0 %v779
  %v838 = vpop.f32.mrf.mxu0
  %v839 = vadd.f32 0.0, %v838
  %840 = vdwg.mxu0
  %841 = vmatpush.msra.mxu0 0.0
  %842 = vmatpush.msra.mxu0 0.0
  %843 = vmatpush.msra.mxu0 0.0
  %844 = vmatpush.msra.mxu0 0.0
  %845 = vmatpush.msra.mxu0 0.0
  %846 = vmatpush.msra.mxu0 0.0
  %847 = vmatpush.msra.mxu0 0.0
  %848 = vmatpush.msra.mxu0 0.0
  %849 = vmatpush.msra.mxu0 0.0
  %850 = vmatpush.msra.mxu0 0.0
  %851 = vmatpush.msra.mxu0 0.0
  %852 = vmatpush.msra.mxu0 0.0
  %853 = vmatpush.msra.mxu0 %v775
  %854 = vmatpush.msra.mxu0 %v774
  %855 = vmatpush.msra.mxu0 %v773
  %856 = vmatpush.msra.mxu0 %v772
  %857 = vmatmul.f32.gmra.mxu0 %v779
  %v858 = vpop.f32.mrf.mxu0
  %v859 = vadd.f32 0.0, %v858
  %860 = vdwg.mxu0
  %s861 = scalar_lea.vmem %s1, 5
  %v862 = vld [vmem:[%s861] ss:$8 sm:$0xf]
  %v864 = vperm.slane %v862, 0
  %v865 = vperm.slane %v862, 1
  %v866 = vperm.slane %v862, 2
  %v867 = vperm.slane %v862, 3
  %v872 = vmul.f32 %v799, %v864
  %v873 = vmul.f32 %v819, %v865
  %v874 = vmul.f32 %v839, %v866
  %v875 = vmul.f32 %v859, %v867
  %v876 = vadd.f32 %v723, %v872
  %v877 = vadd.f32 %v724, %v873
  %v878 = vadd.f32 %v725, %v874
  %v879 = vadd.f32 %v726, %v875
  %880 = vrot.lane.b32.xlu0 %v17, 113
  %v881 = vpop.permute.xlu0 %880
  %882 = vrot.lane.b32.xlu0 %v21, 113
  %v883 = vpop.permute.xlu0 %882
  %884 = vrot.lane.b32.xlu0 %v25, 113
  %v885 = vpop.permute.xlu0 %884
  %886 = vrot.lane.b32.xlu0 %v29, 113
  %v887 = vpop.permute.xlu0 %886
  %888 = vrot.lane.b32.xlu0 %v18, 113
  %v889 = vpop.permute.xlu0 %888
  %890 = vrot.lane.b32.xlu0 %v22, 113
  %v891 = vpop.permute.xlu0 %890
  %892 = vrot.lane.b32.xlu0 %v26, 113
  %v893 = vpop.permute.xlu0 %892
  %894 = vrot.lane.b32.xlu0 %v30, 113
  %v895 = vpop.permute.xlu0 %894
  %896 = vrot.lane.b32.xlu0 %v19, 113
  %v897 = vpop.permute.xlu0 %896
  %898 = vrot.lane.b32.xlu0 %v23, 113
  %v899 = vpop.permute.xlu0 %898
  %900 = vrot.lane.b32.xlu0 %v27, 113
  %v901 = vpop.permute.xlu0 %900
  %902 = vrot.lane.b32.xlu0 %v31, 113
  %v903 = vpop.permute.xlu0 %902
  %904 = vrot.lane.b32.xlu0 %v20, 113
  %v905 = vpop.permute.xlu0 %904
  %906 = vrot.lane.b32.xlu0 %v24, 113
  %v907 = vpop.permute.xlu0 %906
  %908 = vrot.lane.b32.xlu0 %v28, 113
  %v909 = vpop.permute.xlu0 %908
  %910 = vrot.lane.b32.xlu0 %v32, 113
  %v911 = vpop.permute.xlu0 %910
  %vm912 = vcmp.lt.s32.totalorder %v68, 113
  %v913 = vsel %vm912, %v897, %v905
  %v914 = vsel %vm912, %v899, %v907
  %v915 = vsel %vm912, %v901, %v909
  %v916 = vsel %vm912, %v903, %v911
  %v917 = vsel %vm912, %v889, %v897
  %v918 = vsel %vm912, %v891, %v899
  %v919 = vsel %vm912, %v893, %v901
  %v920 = vsel %vm912, %v895, %v903
  %v921 = vsel %vm912, %v881, %v889
  %v922 = vsel %vm912, %v883, %v891
  %v923 = vsel %vm912, %v885, %v893
  %v924 = vsel %vm912, %v887, %v895
  %v925 = vsel %vm912, %v905, %v881
  %v926 = vsel %vm912, %v907, %v883
  %v927 = vsel %vm912, %v909, %v885
  %v928 = vsel %vm912, %v911, %v887
  %s929 = scalar_lea.vmem %s2, 48
  %v930 = vld [vmem:[%s929] sm:$0xff]
  %v932 = vsel %vm87, %v930, 0
  %934 = vmatpush.msra.mxu0 0.0
  %935 = vmatpush.msra.mxu0 0.0
  %936 = vmatpush.msra.mxu0 0.0
  %937 = vmatpush.msra.mxu0 0.0
  %938 = vmatpush.msra.mxu0 0.0
  %939 = vmatpush.msra.mxu0 0.0
  %940 = vmatpush.msra.mxu0 0.0
  %941 = vmatpush.msra.mxu0 0.0
  %942 = vmatpush.msra.mxu0 0.0
  %943 = vmatpush.msra.mxu0 0.0
  %944 = vmatpush.msra.mxu0 0.0
  %945 = vmatpush.msra.mxu0 0.0
  %946 = vmatpush.msra.mxu0 %v924
  %947 = vmatpush.msra.mxu0 %v923
  %948 = vmatpush.msra.mxu0 %v922
  %949 = vmatpush.msra.mxu0 %v921
  %950 = vmatmul.f32.gmra.mxu0 %v932
  %v951 = vpop.f32.mrf.mxu0
  %v952 = vadd.f32 0.0, %v951
  %953 = vdwg.mxu0
  %954 = vmatpush.msra.mxu0 0.0
  %955 = vmatpush.msra.mxu0 0.0
  %956 = vmatpush.msra.mxu0 0.0
  %957 = vmatpush.msra.mxu0 0.0
  %958 = vmatpush.msra.mxu0 0.0
  %959 = vmatpush.msra.mxu0 0.0
  %960 = vmatpush.msra.mxu0 0.0
  %961 = vmatpush.msra.mxu0 0.0
  %962 = vmatpush.msra.mxu0 0.0
  %963 = vmatpush.msra.mxu0 0.0
  %964 = vmatpush.msra.mxu0 0.0
  %965 = vmatpush.msra.mxu0 0.0
  %966 = vmatpush.msra.mxu0 %v920
  %967 = vmatpush.msra.mxu0 %v919
  %968 = vmatpush.msra.mxu0 %v918
  %969 = vmatpush.msra.mxu0 %v917
  %970 = vmatmul.f32.gmra.mxu0 %v932
  %v971 = vpop.f32.mrf.mxu0
  %v972 = vadd.f32 0.0, %v971
  %973 = vdwg.mxu0
  %974 = vmatpush.msra.mxu0 0.0
  %975 = vmatpush.msra.mxu0 0.0
  %976 = vmatpush.msra.mxu0 0.0
  %977 = vmatpush.msra.mxu0 0.0
  %978 = vmatpush.msra.mxu0 0.0
  %979 = vmatpush.msra.mxu0 0.0
  %980 = vmatpush.msra.mxu0 0.0
  %981 = vmatpush.msra.mxu0 0.0
  %982 = vmatpush.msra.mxu0 0.0
  %983 = vmatpush.msra.mxu0 0.0
  %984 = vmatpush.msra.mxu0 0.0
  %985 = vmatpush.msra.mxu0 0.0
  %986 = vmatpush.msra.mxu0 %v916
  %987 = vmatpush.msra.mxu0 %v915
  %988 = vmatpush.msra.mxu0 %v914
  %989 = vmatpush.msra.mxu0 %v913
  %990 = vmatmul.f32.gmra.mxu0 %v932
  %v991 = vpop.f32.mrf.mxu0
  %v992 = vadd.f32 0.0, %v991
  %993 = vdwg.mxu0
  %994 = vmatpush.msra.mxu0 0.0
  %995 = vmatpush.msra.mxu0 0.0
  %996 = vmatpush.msra.mxu0 0.0
  %997 = vmatpush.msra.mxu0 0.0
  %998 = vmatpush.msra.mxu0 0.0
  %999 = vmatpush.msra.mxu0 0.0
  %1000 = vmatpush.msra.mxu0 0.0
  %1001 = vmatpush.msra.mxu0 0.0
  %1002 = vmatpush.msra.mxu0 0.0
  %1003 = vmatpush.msra.mxu0 0.0
  %1004 = vmatpush.msra.mxu0 0.0
  %1005 = vmatpush.msra.mxu0 0.0
  %1006 = vmatpush.msra.mxu0 %v928
  %1007 = vmatpush.msra.mxu0 %v927
  %1008 = vmatpush.msra.mxu0 %v926
  %1009 = vmatpush.msra.mxu0 %v925
  %1010 = vmatmul.f32.gmra.mxu0 %v932
  %v1011 = vpop.f32.mrf.mxu0
  %v1012 = vadd.f32 0.0, %v1011
  %1013 = vdwg.mxu0
  %s1014 = scalar_lea.vmem %s1, 6
  %v1015 = vld [vmem:[%s1014] ss:$8 sm:$0xf]
  %v1017 = vperm.slane %v1015, 0
  %v1018 = vperm.slane %v1015, 1
  %v1019 = vperm.slane %v1015, 2
  %v1020 = vperm.slane %v1015, 3
  %v1025 = vmul.f32 %v952, %v1017
  %v1026 = vmul.f32 %v972, %v1018
  %v1027 = vmul.f32 %v992, %v1019
  %v1028 = vmul.f32 %v1012, %v1020
  %v1029 = vadd.f32 %v876, %v1025
  %v1030 = vadd.f32 %v877, %v1026
  %v1031 = vadd.f32 %v878, %v1027
  %v1032 = vadd.f32 %v879, %v1028
  %1033 = vrot.lane.b32.xlu0 %v17, 112
  %v1034 = vpop.permute.xlu0 %1033
  %1035 = vrot.lane.b32.xlu0 %v21, 112
  %v1036 = vpop.permute.xlu0 %1035
  %1037 = vrot.lane.b32.xlu0 %v25, 112
  %v1038 = vpop.permute.xlu0 %1037
  %1039 = vrot.lane.b32.xlu0 %v29, 112
  %v1040 = vpop.permute.xlu0 %1039
  %1041 = vrot.lane.b32.xlu0 %v18, 112
  %v1042 = vpop.permute.xlu0 %1041
  %1043 = vrot.lane.b32.xlu0 %v22, 112
  %v1044 = vpop.permute.xlu0 %1043
  %1045 = vrot.lane.b32.xlu0 %v26, 112
  %v1046 = vpop.permute.xlu0 %1045
  %1047 = vrot.lane.b32.xlu0 %v30, 112
  %v1048 = vpop.permute.xlu0 %1047
  %1049 = vrot.lane.b32.xlu0 %v19, 112
  %v1050 = vpop.permute.xlu0 %1049
  %1051 = vrot.lane.b32.xlu0 %v23, 112
  %v1052 = vpop.permute.xlu0 %1051
  %1053 = vrot.lane.b32.xlu0 %v27, 112
  %v1054 = vpop.permute.xlu0 %1053
  %1055 = vrot.lane.b32.xlu0 %v31, 112
  %v1056 = vpop.permute.xlu0 %1055
  %1057 = vrot.lane.b32.xlu0 %v20, 112
  %v1058 = vpop.permute.xlu0 %1057
  %1059 = vrot.lane.b32.xlu0 %v24, 112
  %v1060 = vpop.permute.xlu0 %1059
  %1061 = vrot.lane.b32.xlu0 %v28, 112
  %v1062 = vpop.permute.xlu0 %1061
  %1063 = vrot.lane.b32.xlu0 %v32, 112
  %v1064 = vpop.permute.xlu0 %1063
  %vm1065 = vcmp.lt.s32.totalorder %v68, 112
  %v1066 = vsel %vm1065, %v1050, %v1058
  %v1067 = vsel %vm1065, %v1052, %v1060
  %v1068 = vsel %vm1065, %v1054, %v1062
  %v1069 = vsel %vm1065, %v1056, %v1064
  %v1070 = vsel %vm1065, %v1042, %v1050
  %v1071 = vsel %vm1065, %v1044, %v1052
  %v1072 = vsel %vm1065, %v1046, %v1054
  %v1073 = vsel %vm1065, %v1048, %v1056
  %v1074 = vsel %vm1065, %v1034, %v1042
  %v1075 = vsel %vm1065, %v1036, %v1044
  %v1076 = vsel %vm1065, %v1038, %v1046
  %v1077 = vsel %vm1065, %v1040, %v1048
  %v1078 = vsel %vm1065, %v1058, %v1034
  %v1079 = vsel %vm1065, %v1060, %v1036
  %v1080 = vsel %vm1065, %v1062, %v1038
  %v1081 = vsel %vm1065, %v1064, %v1040
  %s1082 = scalar_lea.vmem %s2, 56
  %v1083 = vld [vmem:[%s1082] sm:$0xff]
  %v1085 = vsel %vm87, %v1083, 0
  %1087 = vmatpush.msra.mxu0 0.0
  %1088 = vmatpush.msra.mxu0 0.0
  %1089 = vmatpush.msra.mxu0 0.0
  %1090 = vmatpush.msra.mxu0 0.0
  %1091 = vmatpush.msra.mxu0 0.0
  %1092 = vmatpush.msra.mxu0 0.0
  %1093 = vmatpush.msra.mxu0 0.0
  %1094 = vmatpush.msra.mxu0 0.0
  %1095 = vmatpush.msra.mxu0 0.0
  %1096 = vmatpush.msra.mxu0 0.0
  %1097 = vmatpush.msra.mxu0 0.0
  %1098 = vmatpush.msra.mxu0 0.0
  %1099 = vmatpush.msra.mxu0 %v1077
  %1100 = vmatpush.msra.mxu0 %v1076
  %1101 = vmatpush.msra.mxu0 %v1075
  %1102 = vmatpush.msra.mxu0 %v1074
  %1103 = vmatmul.f32.gmra.mxu0 %v1085
  %v1104 = vpop.f32.mrf.mxu0
  %v1105 = vadd.f32 0.0, %v1104
  %1106 = vdwg.mxu0
  %1107 = vmatpush.msra.mxu0 0.0
  %1108 = vmatpush.msra.mxu0 0.0
  %1109 = vmatpush.msra.mxu0 0.0
  %1110 = vmatpush.msra.mxu0 0.0
  %1111 = vmatpush.msra.mxu0 0.0
  %1112 = vmatpush.msra.mxu0 0.0
  %1113 = vmatpush.msra.mxu0 0.0
  %1114 = vmatpush.msra.mxu0 0.0
  %1115 = vmatpush.msra.mxu0 0.0
  %1116 = vmatpush.msra.mxu0 0.0
  %1117 = vmatpush.msra.mxu0 0.0
  %1118 = vmatpush.msra.mxu0 0.0
  %1119 = vmatpush.msra.mxu0 %v1073
  %1120 = vmatpush.msra.mxu0 %v1072
  %1121 = vmatpush.msra.mxu0 %v1071
  %1122 = vmatpush.msra.mxu0 %v1070
  %1123 = vmatmul.f32.gmra.mxu0 %v1085
  %v1124 = vpop.f32.mrf.mxu0
  %v1125 = vadd.f32 0.0, %v1124
  %1126 = vdwg.mxu0
  %1127 = vmatpush.msra.mxu0 0.0
  %1128 = vmatpush.msra.mxu0 0.0
  %1129 = vmatpush.msra.mxu0 0.0
  %1130 = vmatpush.msra.mxu0 0.0
  %1131 = vmatpush.msra.mxu0 0.0
  %1132 = vmatpush.msra.mxu0 0.0
  %1133 = vmatpush.msra.mxu0 0.0
  %1134 = vmatpush.msra.mxu0 0.0
  %1135 = vmatpush.msra.mxu0 0.0
  %1136 = vmatpush.msra.mxu0 0.0
  %1137 = vmatpush.msra.mxu0 0.0
  %1138 = vmatpush.msra.mxu0 0.0
  %1139 = vmatpush.msra.mxu0 %v1069
  %1140 = vmatpush.msra.mxu0 %v1068
  %1141 = vmatpush.msra.mxu0 %v1067
  %1142 = vmatpush.msra.mxu0 %v1066
  %1143 = vmatmul.f32.gmra.mxu0 %v1085
  %v1144 = vpop.f32.mrf.mxu0
  %v1145 = vadd.f32 0.0, %v1144
  %1146 = vdwg.mxu0
  %1147 = vmatpush.msra.mxu0 0.0
  %1148 = vmatpush.msra.mxu0 0.0
  %1149 = vmatpush.msra.mxu0 0.0
  %1150 = vmatpush.msra.mxu0 0.0
  %1151 = vmatpush.msra.mxu0 0.0
  %1152 = vmatpush.msra.mxu0 0.0
  %1153 = vmatpush.msra.mxu0 0.0
  %1154 = vmatpush.msra.mxu0 0.0
  %1155 = vmatpush.msra.mxu0 0.0
  %1156 = vmatpush.msra.mxu0 0.0
  %1157 = vmatpush.msra.mxu0 0.0
  %1158 = vmatpush.msra.mxu0 0.0
  %1159 = vmatpush.msra.mxu0 %v1081
  %1160 = vmatpush.msra.mxu0 %v1080
  %1161 = vmatpush.msra.mxu0 %v1079
  %1162 = vmatpush.msra.mxu0 %v1078
  %1163 = vmatmul.f32.gmra.mxu0 %v1085
  %v1164 = vpop.f32.mrf.mxu0
  %v1165 = vadd.f32 0.0, %v1164
  %1166 = vdwg.mxu0
  %s1167 = scalar_lea.vmem %s1, 7
  %v1168 = vld [vmem:[%s1167] ss:$8 sm:$0xf]
  %v1170 = vperm.slane %v1168, 0
  %v1171 = vperm.slane %v1168, 1
  %v1172 = vperm.slane %v1168, 2
  %v1173 = vperm.slane %v1168, 3
  %v1178 = vmul.f32 %v1105, %v1170
  %v1179 = vmul.f32 %v1125, %v1171
  %v1180 = vmul.f32 %v1145, %v1172
  %v1181 = vmul.f32 %v1165, %v1173
  %v1182 = vadd.f32 %v1029, %v1178
  %v1183 = vadd.f32 %v1030, %v1179
  %v1184 = vadd.f32 %v1031, %v1180
  %v1185 = vadd.f32 %v1032, %v1181
  %1186 = vrot.lane.b32.xlu0 %v17, 111
  %v1187 = vpop.permute.xlu0 %1186
  %1188 = vrot.lane.b32.xlu0 %v21, 111
  %v1189 = vpop.permute.xlu0 %1188
  %1190 = vrot.lane.b32.xlu0 %v25, 111
  %v1191 = vpop.permute.xlu0 %1190
  %1192 = vrot.lane.b32.xlu0 %v29, 111
  %v1193 = vpop.permute.xlu0 %1192
  %1194 = vrot.lane.b32.xlu0 %v18, 111
  %v1195 = vpop.permute.xlu0 %1194
  %1196 = vrot.lane.b32.xlu0 %v22, 111
  %v1197 = vpop.permute.xlu0 %1196
  %1198 = vrot.lane.b32.xlu0 %v26, 111
  %v1199 = vpop.permute.xlu0 %1198
  %1200 = vrot.lane.b32.xlu0 %v30, 111
  %v1201 = vpop.permute.xlu0 %1200
  %1202 = vrot.lane.b32.xlu0 %v19, 111
  %v1203 = vpop.permute.xlu0 %1202
  %1204 = vrot.lane.b32.xlu0 %v23, 111
  %v1205 = vpop.permute.xlu0 %1204
  %1206 = vrot.lane.b32.xlu0 %v27, 111
  %v1207 = vpop.permute.xlu0 %1206
  %1208 = vrot.lane.b32.xlu0 %v31, 111
  %v1209 = vpop.permute.xlu0 %1208
  %1210 = vrot.lane.b32.xlu0 %v20, 111
  %v1211 = vpop.permute.xlu0 %1210
  %1212 = vrot.lane.b32.xlu0 %v24, 111
  %v1213 = vpop.permute.xlu0 %1212
  %1214 = vrot.lane.b32.xlu0 %v28, 111
  %v1215 = vpop.permute.xlu0 %1214
  %1216 = vrot.lane.b32.xlu0 %v32, 111
  %v1217 = vpop.permute.xlu0 %1216
  %vm1218 = vcmp.lt.s32.totalorder %v68, 111
  %v1219 = vsel %vm1218, %v1203, %v1211
  %v1220 = vsel %vm1218, %v1205, %v1213
  %v1221 = vsel %vm1218, %v1207, %v1215
  %v1222 = vsel %vm1218, %v1209, %v1217
  %v1223 = vsel %vm1218, %v1195, %v1203
  %v1224 = vsel %vm1218, %v1197, %v1205
  %v1225 = vsel %vm1218, %v1199, %v1207
  %v1226 = vsel %vm1218, %v1201, %v1209
  %v1227 = vsel %vm1218, %v1187, %v1195
  %v1228 = vsel %vm1218, %v1189, %v1197
  %v1229 = vsel %vm1218, %v1191, %v1199
  %v1230 = vsel %vm1218, %v1193, %v1201
  %v1231 = vsel %vm1218, %v1211, %v1187
  %v1232 = vsel %vm1218, %v1213, %v1189
  %v1233 = vsel %vm1218, %v1215, %v1191
  %v1234 = vsel %vm1218, %v1217, %v1193
  %s1235 = scalar_lea.vmem %s2, 64
  %v1236 = vld [vmem:[%s1235] sm:$0xff]
  %v1238 = vsel %vm87, %v1236, 0
  %1240 = vmatpush.msra.mxu0 0.0
  %1241 = vmatpush.msra.mxu0 0.0
  %1242 = vmatpush.msra.mxu0 0.0
  %1243 = vmatpush.msra.mxu0 0.0
  %1244 = vmatpush.msra.mxu0 0.0
  %1245 = vmatpush.msra.mxu0 0.0
  %1246 = vmatpush.msra.mxu0 0.0
  %1247 = vmatpush.msra.mxu0 0.0
  %1248 = vmatpush.msra.mxu0 0.0
  %1249 = vmatpush.msra.mxu0 0.0
  %1250 = vmatpush.msra.mxu0 0.0
  %1251 = vmatpush.msra.mxu0 0.0
  %1252 = vmatpush.msra.mxu0 %v1230
  %1253 = vmatpush.msra.mxu0 %v1229
  %1254 = vmatpush.msra.mxu0 %v1228
  %1255 = vmatpush.msra.mxu0 %v1227
  %1256 = vmatmul.f32.gmra.mxu0 %v1238
  %v1257 = vpop.f32.mrf.mxu0
  %v1258 = vadd.f32 0.0, %v1257
  %1259 = vdwg.mxu0
  %1260 = vmatpush.msra.mxu0 0.0
  %1261 = vmatpush.msra.mxu0 0.0
  %1262 = vmatpush.msra.mxu0 0.0
  %1263 = vmatpush.msra.mxu0 0.0
  %1264 = vmatpush.msra.mxu0 0.0
  %1265 = vmatpush.msra.mxu0 0.0
  %1266 = vmatpush.msra.mxu0 0.0
  %1267 = vmatpush.msra.mxu0 0.0
  %1268 = vmatpush.msra.mxu0 0.0
  %1269 = vmatpush.msra.mxu0 0.0
  %1270 = vmatpush.msra.mxu0 0.0
  %1271 = vmatpush.msra.mxu0 0.0
  %1272 = vmatpush.msra.mxu0 %v1226
  %1273 = vmatpush.msra.mxu0 %v1225
  %1274 = vmatpush.msra.mxu0 %v1224
  %1275 = vmatpush.msra.mxu0 %v1223
  %1276 = vmatmul.f32.gmra.mxu0 %v1238
  %v1277 = vpop.f32.mrf.mxu0
  %v1278 = vadd.f32 0.0, %v1277
  %1279 = vdwg.mxu0
  %1280 = vmatpush.msra.mxu0 0.0
  %1281 = vmatpush.msra.mxu0 0.0
  %1282 = vmatpush.msra.mxu0 0.0
  %1283 = vmatpush.msra.mxu0 0.0
  %1284 = vmatpush.msra.mxu0 0.0
  %1285 = vmatpush.msra.mxu0 0.0
  %1286 = vmatpush.msra.mxu0 0.0
  %1287 = vmatpush.msra.mxu0 0.0
  %1288 = vmatpush.msra.mxu0 0.0
  %1289 = vmatpush.msra.mxu0 0.0
  %1290 = vmatpush.msra.mxu0 0.0
  %1291 = vmatpush.msra.mxu0 0.0
  %1292 = vmatpush.msra.mxu0 %v1222
  %1293 = vmatpush.msra.mxu0 %v1221
  %1294 = vmatpush.msra.mxu0 %v1220
  %1295 = vmatpush.msra.mxu0 %v1219
  %1296 = vmatmul.f32.gmra.mxu0 %v1238
  %v1297 = vpop.f32.mrf.mxu0
  %v1298 = vadd.f32 0.0, %v1297
  %1299 = vdwg.mxu0
  %1300 = vmatpush.msra.mxu0 0.0
  %1301 = vmatpush.msra.mxu0 0.0
  %1302 = vmatpush.msra.mxu0 0.0
  %1303 = vmatpush.msra.mxu0 0.0
  %1304 = vmatpush.msra.mxu0 0.0
  %1305 = vmatpush.msra.mxu0 0.0
  %1306 = vmatpush.msra.mxu0 0.0
  %1307 = vmatpush.msra.mxu0 0.0
  %1308 = vmatpush.msra.mxu0 0.0
  %1309 = vmatpush.msra.mxu0 0.0
  %1310 = vmatpush.msra.mxu0 0.0
  %1311 = vmatpush.msra.mxu0 0.0
  %1312 = vmatpush.msra.mxu0 %v1234
  %1313 = vmatpush.msra.mxu0 %v1233
  %1314 = vmatpush.msra.mxu0 %v1232
  %1315 = vmatpush.msra.mxu0 %v1231
  %1316 = vmatmul.f32.gmra.mxu0 %v1238
  %v1317 = vpop.f32.mrf.mxu0
  %v1318 = vadd.f32 0.0, %v1317
  %1319 = vdwg.mxu0
  %s1320 = scalar_lea.vmem %s1, 32
  %v1321 = vld [vmem:[%s1320] ss:$8 sm:$0xf]
  %v1323 = vperm.slane %v1321, 0
  %v1324 = vperm.slane %v1321, 1
  %v1325 = vperm.slane %v1321, 2
  %v1326 = vperm.slane %v1321, 3
  %v1331 = vmul.f32 %v1258, %v1323
  %v1332 = vmul.f32 %v1278, %v1324
  %v1333 = vmul.f32 %v1298, %v1325
  %v1334 = vmul.f32 %v1318, %v1326
  %v1335 = vadd.f32 %v1182, %v1331
  %v1336 = vadd.f32 %v1183, %v1332
  %v1337 = vadd.f32 %v1184, %v1333
  %v1338 = vadd.f32 %v1185, %v1334
  %v1339 = vld [vmem:[%s3] sm:$0xff]
  %1341 = vset.pattern.permute.xlu0 0
  %1342 = vperm.xlu0 %1341, %v1339
  %v1343 = vpop.permute.xlu0 %1342
  %v1345 = vadd.f32 %v1335, %v1343
  %v1346 = vadd.f32 %v1336, %v1343
  %v1347 = vadd.f32 %v1337, %v1343
  %v1348 = vadd.f32 %v1338, %v1343
  %1349 = vst [vmem:[%s4] sm:$0xff] %v1345
  %1350 = vst [vmem:[%s4 + $0x8] sm:$0xff] %v1346
  %1351 = vst [vmem:[%s4 + $0x10] sm:$0xff] %v1347
  %1352 = vst [vmem:[%s4 + $0x18] sm:$0xff] %v1348
  // Predicated region
  $region18: #{depthwise_down.1} parent=0 // pred_check
    _
  $region19: #{depthwise_down.1} parent=0 // pred_check_branch
    %1354 = sbr.rel (0) target = $region21
  $region20: #{depthwise_down.1} parent=0 // pred_region
    _
  $region21: #{depthwise_down.1} parent=0 // pred_fallthru
    _
  // Predicated region
  $region22: #{depthwise_down.1} parent=0 // pred_check
    _
  $region23: #{depthwise_down.1} parent=0 // pred_check_branch
    %1356 = sbr.rel (0) target = $region25
  $region24: #{depthwise_down.1} parent=0 // pred_region
    _
  $region25: #{depthwise_down.1} parent=0 // pred_fallthru
    _

</llo_original>
